<compile_context>
chip_gen: v6e
topology: v6e:2x2x1
jax: 0.10.0
libtpu: 0.0.40
codegen_flags: <defaults>
</compile_context>

<pallas_src>
import jax
import jax.numpy as jnp
from jax.experimental import pallas as pl
from jax.experimental.pallas import tpu as pltpu


_LANE = 1024            # lane-dense tile width (multiple of 128)
_MAX_BLOCK_ROWS = 512   # 512 x 1024 f32 = 2 MiB / buffer -> ~8 MiB double-buffered in+out


def _threshold_kernel(thr_ref, x_ref, o_ref):
    # Scalar threshold lives in SMEM (scalar prefetch); broadcast compare on the VPU,
    # cast bool -> int32 (torch.int == int32).
    o_ref[...] = (x_ref[...] >= thr_ref[0]).astype(jnp.int32)


def threshold_forward(x, threshold=128):
    """Pallas equivalent of Threshold.forward: (x >= threshold) as int32, same shape as x."""
    orig_shape = x.shape
    total = x.size

    # Flatten to lane-dense 2D (rows, 1024); pad to a whole number of tiles.
    flat = x.reshape(-1)
    rows = max(1, -(-total // _LANE))                 # cdiv(total, LANE)
    block_rows = min(_MAX_BLOCK_ROWS, rows)
    rows_padded = -(-rows // block_rows) * block_rows  # cdiv(rows, block_rows) * block_rows
    padded_len = rows_padded * _LANE
    if padded_len != total:
        flat = jnp.pad(flat, (0, padded_len - total))
    x2d = flat.reshape(rows_padded, _LANE)

    # Threshold compared in the input's dtype domain; delivered via SMEM scalar prefetch
    # (one compiled kernel serves all threshold values).
    thr = jnp.asarray([threshold], dtype=x.dtype)

    grid = (rows_padded // block_rows,)

    out2d = pl.pallas_call(
        _threshold_kernel,
        out_shape=jax.ShapeDtypeStruct((rows_padded, _LANE), jnp.int32),
        grid_spec=pltpu.PrefetchScalarGridSpec(
            num_scalar_prefetch=1,
            grid=grid,
            # index_maps receive the scalar-prefetch ref as a trailing positional arg
            in_specs=[pl.BlockSpec((block_rows, _LANE), lambda i, thr: (i, 0))],
            out_specs=pl.BlockSpec((block_rows, _LANE), lambda i, thr: (i, 0)),
        ),
        compiler_params=pltpu.CompilerParams(
            dimension_semantics=("parallel",),
        ),
    )(thr, x2d)

    # Strip padding and restore original NCHW shape.
    return out2d.reshape(-1)[:total].reshape(orig_shape)


if __name__ == "__main__":
    key = jax.random.PRNGKey(0)
    # small image-like input, values in [0, 255] (kept f32 for TPU friendliness)
    x = jax.random.uniform(key, (2, 4, 16, 16), dtype=jnp.float32, minval=0.0, maxval=255.0)

    out = threshold_forward(x, threshold=128)
    out = jax.block_until_ready(out)

    # sanity check against plain-JAX reference
    ref = (x >= 128).astype(jnp.int32)
    assert out.dtype == jnp.int32
    assert out.shape == x.shape
    assert bool(jnp.all(out == ref))

    print("KERNEL_OK")
</pallas_src>

<mosaic_0001>
module attributes {stable_mosaic.version = 11 : i64} {
  func.func @_threshold_kernel(%arg0: i32, %arg1: memref<1xf32, #tpu.memory_space<smem>>, %arg2: memref<2x1024xf32, #tpu.memory_space<vmem>>, %arg3: memref<2x1024xi32, #tpu.memory_space<vmem>>) attributes {dimension_semantics = [#tpu.dimension_semantics<parallel>], iteration_bounds = array<i64: 1>, scalar_prefetch = 1 : i64, scratch_operands = 0 : i64, tpu.core_type = #tpu.core_type<tc>, window_params = [{transform_indices = @transform_0, window_bounds = array<i64: 2, 1024>}, {transform_indices = @transform_1, window_bounds = array<i64: 2, 1024>}]} {
    %c0 = arith.constant 0 : index
    %c0_0 = arith.constant 0 : index
    %0 = vector.load %arg2[%c0, %c0_0] : memref<2x1024xf32, #tpu.memory_space<vmem>>, vector<2x1024xf32>
    %c0_1 = arith.constant 0 : index
    %1 = memref.load %arg1[%c0_1] : memref<1xf32, #tpu.memory_space<smem>>
    %2 = vector.broadcast %1 : f32 to vector<2x1024xf32>
    %3 = arith.cmpf oge, %0, %2 : vector<2x1024xf32>
    %4 = arith.extui %3 : vector<2x1024xi1> to vector<2x1024xi32>
    %c0_2 = arith.constant 0 : index
    %c0_3 = arith.constant 0 : index
    %5 = vector.load %arg3[%c0_2, %c0_3] : memref<2x1024xi32, #tpu.memory_space<vmem>>, vector<2x1024xi32>
    tpu.vector_store %arg3[%c0_2, %c0_3], %4 {strides = array<i32>} : memref<2x1024xi32, #tpu.memory_space<vmem>>, vector<2x1024xi32>,
    return
  }
  func.func @transform_0(%arg0: i32, %arg1: memref<1xf32, #tpu.memory_space<smem>>) -> (i32, i32) {
    %c0_i32 = arith.constant 0 : i32
    %c0_i32_0 = arith.constant 0 : i32
    return %arg0, %c0_i32 : i32, i32
  }
  func.func @transform_1(%arg0: i32, %arg1: memref<1xf32, #tpu.memory_space<smem>>) -> (i32, i32) {
    %c0_i32 = arith.constant 0 : i32
    %c0_i32_0 = arith.constant 0 : i32
    return %arg0, %c0_i32 : i32, i32
  }
}

</mosaic_0001>

<llo_original>
// kernel: tpu_custom_call.1
$region0: #{tpu_custom_call.1}
  #allocation0 [shape = 'u32[]', space=smem, size = 0x4, offset = 0x4, fixed_abs, tag = 'smem constant byte address 0x4 - core index']
  #allocation1 [shape = 'u32[144,128]{1,0:T(1,128)}', space=vmem, size = 0x12000, scoped, tag = 'internal scratch']
  #allocation2 [shape = 's32[1]{0}', space=sflag, size = 0x4, scoped, tag = 'scoped memory for tpu_custom_call.1']
  #allocation3 [shape = 'f32[1]{0:T(128)S(6)}', space=smem, size = 0x200, scoped, tag = 'prefetched SMEM operand 0']
  %s0 = inlined_call_operand.<no memory space> [shape: f32[1], index: 0, kind: input, shape index: {}]
  %s1 = inlined_call_operand.hbm [shape: f32[2,1024], index: 1, kind: input, shape index: {}]
  %s2 = inlined_call_operand.hbm [shape: s32[2,1024], index: 2, kind: output, shape index: {}]
  %s3 = sld [smem:[#allocation0]]
  $region18: #{tpu_custom_call.1} parent=0
    _
  %s5 = ssub.s32 1, %s3
  %s6 = scalar_select 0, %s5, %s3
  %7 = sst [smem:[#allocation3]] %s0
  $region1: #{tpu_custom_call.1} parent=0
    #allocation4 [shape = 'u8[8192]{0}', space=vmem, size = 0x2000, scoped, tag = 'input window, operand 1, single buffered']
    #allocation5 [shape = 's32[1]{0}', space=sflag, size = 0x4, scoped, tag = 'scoped memory for tpu_custom_call.1']
    #allocation6 [shape = 's32[1]{0}', space=sflag, size = 0x4, scoped, tag = 'scoped memory for tpu_custom_call.1']
    #allocation7 [shape = 'u8[8192]{0}', space=vmem, size = 0x2000, scoped, tag = 'output window, operand 0, single buffered']
    %8 = vsyncpa [#allocation5], 0
    %9 = vsyncpa [#allocation6], 0
    // Predicated region
    $region2: #{tpu_custom_call.1} parent=1 // pred_check
      _
    $region3: #{tpu_custom_call.1} parent=1 // pred_check_branch
      %11 = sbr.rel (0) target = $region5
    $region4: #{tpu_custom_call.1} parent=1 // pred_region
      %s13 = ssub.s32 256, 256
      %14 = vsyncadd [#allocation5], %s13
      %s16 = sshll.u32 [#allocation4], 4
      %s17 = int_to_ptr.vmem [resolvable:$true] %s16
      %19 = dma.hbm_to_vmem [thread:$0]  %s1, 256, %s17, [#allocation5]
    $region5: #{tpu_custom_call.1} parent=1 // pred_fallthru
      _
    // Predicated region
    $region6: #{tpu_custom_call.1} parent=1 // pred_check
      _
    $region7: #{tpu_custom_call.1} parent=1 // pred_check_branch
      %21 = sbr.rel (0) target = $region9
    $region8: #{tpu_custom_call.1} parent=1 // pred_region
      %22 = dma.done [#allocation5], 256
    $region9: #{tpu_custom_call.1} parent=1 // pred_fallthru
      _
    %v23 = vld [vmem:[#allocation4] sm:$0xff]
    %v24 = vld [vmem:[#allocation4 + $0x8] sm:$0xff]
    %s25 = sld [smem:[#allocation3]]
    %v26 = vstv %s25
    %vm27 = vcmp.ge.f32.partialorder %v23, %v26
    %vm28 = vcmp.ge.f32.partialorder %v24, %v26
    %v29 = vsel %vm27, 1, 0
    %v30 = vsel %vm28, 1, 0
    %31 = vst [vmem:[#allocation7] sm:$0xff] %v29
    %32 = vst [vmem:[#allocation7 + $0x8] sm:$0xff] %v30
    // Predicated region
    $region10: #{tpu_custom_call.1} parent=1 // pred_check
      _
    $region11: #{tpu_custom_call.1} parent=1 // pred_check_branch
      %34 = sbr.rel (0) target = $region13
    $region12: #{tpu_custom_call.1} parent=1 // pred_region
      %s36 = ssub.s32 256, 256
      %37 = vsyncadd [#allocation6], %s36
      %s39 = sshll.u32 [#allocation7], 4
      %s40 = int_to_ptr.vmem [resolvable:$true] %s39
      %42 = dma.vmem_to_hbm [thread:$0]  %s40, 256, %s2, [#allocation6]
    $region13: #{tpu_custom_call.1} parent=1 // pred_fallthru
      _
    // Predicated region
    $region14: #{tpu_custom_call.1} parent=1 // pred_check
      _
    $region15: #{tpu_custom_call.1} parent=1 // pred_check_branch
      %44 = sbr.rel (0) target = $region17
    $region16: #{tpu_custom_call.1} parent=1 // pred_region
      %45 = dma.done [#allocation6], 256
    $region17: #{tpu_custom_call.1} parent=1 // pred_fallthru
      _
    %46 = vsyncpa [#allocation5], 1
    %47 = vsyncpa [#allocation6], 1

</llo_original>
